<compile_context>
chip_gen: v7x
topology: tpu7x:2x2x1
jax: 0.10.0
libtpu: 0.0.40
codegen_flags: <defaults>
</compile_context>

<pallas_src>
import jax
import jax.numpy as jnp
from jax import lax
from jax.experimental import pallas as pl
from jax.experimental.pallas import tpu as pltpu

BN_EPS = 1e-5


# ---------------------------------------------------------------------------
# Kernel
# ---------------------------------------------------------------------------
def _make_res_layer_kernel(N, H, W, Cin, Cout, *, add_residual):
    HW = H * W
    NHW = N * HW
    # Tap order matches the packed weight layout: t = kh*3 + kw.
    TAPS = [(kh - 1, kw - 1) for kh in range(3) for kw in range(3)]

    def kernel(x_ref, hh_ref, ww_ref, w1_ref, g1_ref, b1_ref,
               w2_ref, g2_ref, b2_ref, out_ref):
        hh = hh_ref[...]          # (1, NHW) int32 pixel-row index
        ww = ww_ref[...]          # (1, NHW) int32 pixel-col index

        def tap_window(act, dy, dx):
            """act shifted so lane L holds act[:, L + dy*W + dx], zero-padded at
            image borders. The border mask also kills roll wraparound and
            cross-image bleed in the flattened N*H*W lane axis."""
            s = dy * W + dx
            # TODO(synk): pltpu.roll would put the shift on the XLU; jnp.roll
            # (static concatenate-of-slices) is used for portability.
            win = act if s == 0 else jnp.roll(act, shift=-s, axis=1)
            conds = []
            if dy == -1:
                conds.append(hh >= 1)
            elif dy == 1:
                conds.append(hh <= H - 2)
            if dx == -1:
                conds.append(ww >= 1)
            elif dx == 1:
                conds.append(ww <= W - 2)
            if conds:
                ok = conds[0]
                for c in conds[1:]:
                    ok = ok & c
                win = jnp.where(ok, win, 0.0)
            return win

        def conv3x3_bn(act, w_ref, gamma_ref, beta_ref):
            """act: (cin, NHW) f32 -> conv3x3 (SAME, bias folded into BN) + BN."""
            cin = act.shape[0]
            if cin < 64:
                # One MXU matmul, K = 9*cin; patch built in-register (no scratch).
                patch = jnp.concatenate(
                    [tap_window(act, dy, dx) for dy, dx in TAPS], axis=0)
                acc = jnp.dot(w_ref[...], patch,
                              preferred_element_type=jnp.float32)   # (cout, NHW)
            else:
                # Large Cin: never materialize the 9x patch; accumulate 9 K=cin
                # matmuls (MXU stays efficient, VMEM stays flat).
                acc = jnp.dot(w_ref[:, 4 * cin:5 * cin], act,
                              preferred_element_type=jnp.float32)
                for t, (dy, dx) in enumerate(TAPS):
                    if (dy, dx) == (0, 0):
                        continue
                    acc = acc + jnp.dot(w_ref[:, t * cin:(t + 1) * cin],
                                        tap_window(act, dy, dx),
                                        preferred_element_type=jnp.float32)
            # Train-mode BatchNorm, one pass (biased variance, eps=1e-5).
            # Conv bias is exactly canceled by the mean subtraction -> omitted.
            inv_n = 1.0 / float(NHW)
            mean = jnp.sum(acc, axis=1, keepdims=True) * inv_n        # (cout, 1)
            ex2 = jnp.sum(acc * acc, axis=1, keepdims=True) * inv_n
            var = jnp.maximum(ex2 - mean * mean, 0.0)
            scale = gamma_ref[...] * lax.rsqrt(var + BN_EPS)
            shift = beta_ref[...] - mean * scale
            return acc * scale + shift

        # (N, Cin, HW) -> in-register (Cin, N*HW), channels on sublanes,
        # pixels lane-dense.
        x_flat = jnp.concatenate([x_ref[n] for n in range(N)], axis=1)

        # layer 1: conv -> BN -> ReLU
        h1 = jnp.maximum(conv3x3_bn(x_flat, w1_ref, g1_ref, b1_ref), 0.0)
        # layer 2: conv -> BN, then residual + final ReLU fused into the store.
        y = conv3x3_bn(h1, w2_ref, g2_ref, b2_ref)
        if add_residual:
            y = y + x_flat
        y = jnp.maximum(y, 0.0)
        for n in range(N):
            out_ref[n, :, :] = y[:, n * HW:(n + 1) * HW]

    return kernel


# ---------------------------------------------------------------------------
# Wrapper
# ---------------------------------------------------------------------------
def _pack_conv_weight(w_hwio):
    """(3,3,Cin,Cout) HWIO -> (Cout, 9*Cin) f32, K ordered (kh*3+kw, ci)."""
    cin, cout = w_hwio.shape[2], w_hwio.shape[3]
    w = w_hwio.reshape(9 * cin, cout)
    return jnp.transpose(w, (1, 0)).astype(jnp.float32)


@jax.jit
def res_layer_forward(x_nchw, params):
    N, Cin, H, W = x_nchw.shape
    Cout = params['w1'].shape[-1]
    HW = H * W
    NHW = N * HW
    add_residual = (Cin == Cout)

    # Single-shot-in-VMEM footprint estimate (bytes).
    patch_rows = 9 * max(Cin, Cout) if max(Cin, Cout) < 64 else 0
    est_bytes = 4 * (N * (Cin + Cout) * HW                 # x + out
                     + 2 * NHW                             # hh / ww index rows
                     + patch_rows * NHW                    # in-register im2col patch
                     + (2 * Cin + 5 * Cout) * NHW          # live f32 activations
                     + 9 * Cout * (Cin + Cout) + 4 * Cout) # weights / BN params
    # Cap below the smallest physical VMEM per TensorCore (v7x: 64 MiB).
    if est_bytes > 40 * 1024 * 1024:
        raise NotImplementedError(
            f"ResLayer Pallas kernel: ~{est_bytes / 2**20:.1f} MiB exceeds the "
            "single-shot VMEM budget; the tiled (gridded) variant is required.")
    vmem_limit = int(min(max(2 * est_bytes, 16 * 1024 * 1024), 48 * 1024 * 1024))

    x_flat = x_nchw.reshape(N, Cin, HW).astype(jnp.float32)   # free reshape
    q = jnp.arange(NHW, dtype=jnp.int32) % HW
    hh = (q // W).reshape(1, NHW)
    ww = (q % W).reshape(1, NHW)

    w1p = _pack_conv_weight(params['w1'])
    w2p = _pack_conv_weight(params['w2'])
    g1 = params['g1'].reshape(Cout, 1).astype(jnp.float32)
    be1 = params['be1'].reshape(Cout, 1).astype(jnp.float32)
    g2 = params['g2'].reshape(Cout, 1).astype(jnp.float32)
    be2 = params['be2'].reshape(Cout, 1).astype(jnp.float32)
    # params['b1'] / params['b2'] (conv biases) are exactly canceled by
    # train-mode BatchNorm and therefore are not passed to the kernel.

    kernel = _make_res_layer_kernel(N, H, W, Cin, Cout, add_residual=add_residual)

    out_flat = pl.pallas_call(
        kernel,
        out_shape=jax.ShapeDtypeStruct((N, Cout, HW), jnp.float32),
        in_specs=[pl.BlockSpec(memory_space=pltpu.MemorySpace.VMEM)] * 9,
        out_specs=pl.BlockSpec(memory_space=pltpu.MemorySpace.VMEM),
        compiler_params=pltpu.CompilerParams(vmem_limit_bytes=vmem_limit),
    )(x_flat, hh, ww, w1p, g1, be1, w2p, g2, be2)

    return out_flat.reshape(N, Cout, H, W)                    # free reshape back


# ---------------------------------------------------------------------------
# Parameters (PyTorch-style init; conv weights kept in HWIO)
# ---------------------------------------------------------------------------
def init_params(key, cin, cout):
    k1, k2 = jax.random.split(key)

    def conv_init(k, ci, co):
        fan_in = ci * 9
        bound = 1.0 / jnp.sqrt(jnp.float32(fan_in))
        kw, kb = jax.random.split(k)
        w = jax.random.uniform(kw, (3, 3, ci, co), jnp.float32, -bound, bound)
        b = jax.random.uniform(kb, (co,), jnp.float32, -bound, bound)
        return w, b

    w1, b1 = conv_init(k1, cin, cout)
    w2, b2 = conv_init(k2, cout, cout)
    ones = jnp.ones((cout,), jnp.float32)      # BN weight default
    zeros = jnp.zeros((cout,), jnp.float32)    # BN bias default
    return dict(w1=w1, b1=b1, g1=ones, be1=zeros,
                w2=w2, b2=b2, g2=ones, be2=zeros)


# ---------------------------------------------------------------------------
# Pure-JAX reference (NCHW, full PyTorch semantics incl. conv bias)
# ---------------------------------------------------------------------------
def _ref_conv_bn(x, w_hwio, b, gamma, beta, relu, residual=None):
    w_oihw = jnp.transpose(w_hwio, (3, 2, 0, 1))
    y = lax.conv_general_dilated(x, w_oihw, (1, 1), 'SAME',
                                 dimension_numbers=('NCHW', 'OIHW', 'NCHW'),
                                 precision=lax.Precision.HIGHEST)
    y = y + b[None, :, None, None]
    mean = jnp.mean(y, axis=(0, 2, 3), keepdims=True)
    var = jnp.mean(jnp.square(y - mean), axis=(0, 2, 3), keepdims=True)
    y = (y - mean) * lax.rsqrt(var + BN_EPS)
    y = y * gamma[None, :, None, None] + beta[None, :, None, None]
    if residual is not None:
        y = y + residual
    if relu:
        y = jnp.maximum(y, 0.0)
    return y


def ref_forward(x, p):
    h = _ref_conv_bn(x, p['w1'], p['b1'], p['g1'], p['be1'], relu=True)
    res = x if x.shape[1] == h.shape[1] else None
    h = _ref_conv_bn(h, p['w2'], p['b2'], p['g2'], p['be2'], relu=True,
                     residual=res)
    return h


if __name__ == "__main__":
    key = jax.random.PRNGKey(0)
    kx, kp = jax.random.split(key)

    N, C, H, W = 2, 4, 16, 16            # in_channels == out_channels -> residual active
    x = jax.random.normal(kx, (N, C, H, W), jnp.float32)
    params = init_params(kp, C, C)

    out = jax.block_until_ready(res_layer_forward(x, params))
    assert out.shape == (N, C, H, W)

    ref = ref_forward(x, params)
    err = float(jnp.max(jnp.abs(out - ref)))
    assert err < 1e-2, f"max abs err {err}"

    # TODO(synk): BatchNorm running_mean/running_var buffer updates (training-time
    # module state) are not reproduced; they do not affect the forward output.
    print("KERNEL_OK")
</pallas_src>

<mosaic_0001>
module attributes {stable_mosaic.version = 11 : i64} {
  func.func @kernel(%arg0: memref<2x4x256xf32, #tpu.memory_space<vmem>>, %arg1: memref<1x512xi32, #tpu.memory_space<vmem>>, %arg2: memref<1x512xi32, #tpu.memory_space<vmem>>, %arg3: memref<4x36xf32, #tpu.memory_space<vmem>>, %arg4: memref<4x1xf32, #tpu.memory_space<vmem>>, %arg5: memref<4x1xf32, #tpu.memory_space<vmem>>, %arg6: memref<4x36xf32, #tpu.memory_space<vmem>>, %arg7: memref<4x1xf32, #tpu.memory_space<vmem>>, %arg8: memref<4x1xf32, #tpu.memory_space<vmem>>, %arg9: memref<2x4x256xf32, #tpu.memory_space<vmem>>) attributes {dimension_semantics = [], scalar_prefetch = 0 : i64, scratch_operands = 0 : i64, tpu.core_type = #tpu.core_type<tc>} {
    %c0 = arith.constant 0 : index
    %c0_0 = arith.constant 0 : index
    %0 = vector.load %arg1[%c0, %c0_0] : memref<1x512xi32, #tpu.memory_space<vmem>>, vector<1x512xi32>
    %c0_1 = arith.constant 0 : index
    %c0_2 = arith.constant 0 : index
    %1 = vector.load %arg2[%c0_1, %c0_2] : memref<1x512xi32, #tpu.memory_space<vmem>>, vector<1x512xi32>
    %c0_3 = arith.constant 0 : index
    %c0_4 = arith.constant 0 : index
    %c0_5 = arith.constant 0 : index
    %2 = vector.load %arg0[%c0_3, %c0_4, %c0_5] : memref<2x4x256xf32, #tpu.memory_space<vmem>>, vector<1x4x256xf32>
    %3 = vector.shape_cast %2 : vector<1x4x256xf32> to vector<4x256xf32>
    %c1 = arith.constant 1 : index
    %c0_6 = arith.constant 0 : index
    %c0_7 = arith.constant 0 : index
    %4 = vector.load %arg0[%c1, %c0_6, %c0_7] : memref<2x4x256xf32, #tpu.memory_space<vmem>>, vector<1x4x256xf32>
    %5 = vector.shape_cast %4 : vector<1x4x256xf32> to vector<4x256xf32>
    %6 = tpu.concatenate %3, %5 in 1 : vector<4x256xf32>, vector<4x256xf32> -> vector<4x512xf32>
    %7 = vector.extract_strided_slice %6 {offsets = [0, 495], sizes = [4, 17], strides = [1, 1]} : vector<4x512xf32> to vector<4x17xf32>
    %8 = vector.extract_strided_slice %6 {offsets = [0, 0], sizes = [4, 495], strides = [1, 1]} : vector<4x512xf32> to vector<4x495xf32>
    %9 = tpu.concatenate %7, %8 in 1 : vector<4x17xf32>, vector<4x495xf32> -> vector<4x512xf32>
    %c1_i32 = arith.constant 1 : i32
    %10 = vector.broadcast %c1_i32 : i32 to vector<1x512xi32>
    %11 = arith.cmpi sge, %0, %10 : vector<1x512xi32>
    %c1_i32_8 = arith.constant 1 : i32
    %12 = vector.broadcast %c1_i32_8 : i32 to vector<1x512xi32>
    %13 = arith.cmpi sge, %1, %12 : vector<1x512xi32>
    %14 = arith.andi %11, %13 : vector<1x512xi1>
    %cst = arith.constant 0.000000e+00 : f32
    %15 = vector.shape_cast %14 : vector<1x512xi1> to vector<1x512xi1>
    %16 = vector.broadcast %15 : vector<1x512xi1> to vector<4x512xi1>
    %17 = vector.broadcast %cst : f32 to vector<4x512xf32>
    %18 = arith.select %16, %9, %17 : vector<4x512xi1>, vector<4x512xf32>
    %19 = vector.extract_strided_slice %6 {offsets = [0, 496], sizes = [4, 16], strides = [1, 1]} : vector<4x512xf32> to vector<4x16xf32>
    %20 = vector.extract_strided_slice %6 {offsets = [0, 0], sizes = [4, 496], strides = [1, 1]} : vector<4x512xf32> to vector<4x496xf32>
    %21 = tpu.concatenate %19, %20 in 1 : vector<4x16xf32>, vector<4x496xf32> -> vector<4x512xf32>
    %c1_i32_9 = arith.constant 1 : i32
    %22 = vector.broadcast %c1_i32_9 : i32 to vector<1x512xi32>
    %23 = arith.cmpi sge, %0, %22 : vector<1x512xi32>
    %cst_10 = arith.constant 0.000000e+00 : f32
    %24 = vector.shape_cast %23 : vector<1x512xi1> to vector<1x512xi1>
    %25 = vector.broadcast %24 : vector<1x512xi1> to vector<4x512xi1>
    %26 = vector.broadcast %cst_10 : f32 to vector<4x512xf32>
    %27 = arith.select %25, %21, %26 : vector<4x512xi1>, vector<4x512xf32>
    %28 = vector.extract_strided_slice %6 {offsets = [0, 497], sizes = [4, 15], strides = [1, 1]} : vector<4x512xf32> to vector<4x15xf32>
    %29 = vector.extract_strided_slice %6 {offsets = [0, 0], sizes = [4, 497], strides = [1, 1]} : vector<4x512xf32> to vector<4x497xf32>
    %30 = tpu.concatenate %28, %29 in 1 : vector<4x15xf32>, vector<4x497xf32> -> vector<4x512xf32>
    %c1_i32_11 = arith.constant 1 : i32
    %31 = vector.broadcast %c1_i32_11 : i32 to vector<1x512xi32>
    %32 = arith.cmpi sge, %0, %31 : vector<1x512xi32>
    %c14_i32 = arith.constant 14 : i32
    %33 = vector.broadcast %c14_i32 : i32 to vector<1x512xi32>
    %34 = arith.cmpi sle, %1, %33 : vector<1x512xi32>
    %35 = arith.andi %32, %34 : vector<1x512xi1>
    %cst_12 = arith.constant 0.000000e+00 : f32
    %36 = vector.shape_cast %35 : vector<1x512xi1> to vector<1x512xi1>
    %37 = vector.broadcast %36 : vector<1x512xi1> to vector<4x512xi1>
    %38 = vector.broadcast %cst_12 : f32 to vector<4x512xf32>
    %39 = arith.select %37, %30, %38 : vector<4x512xi1>, vector<4x512xf32>
    %40 = vector.extract_strided_slice %6 {offsets = [0, 511], sizes = [4, 1], strides = [1, 1]} : vector<4x512xf32> to vector<4x1xf32>
    %41 = vector.extract_strided_slice %6 {offsets = [0, 0], sizes = [4, 511], strides = [1, 1]} : vector<4x512xf32> to vector<4x511xf32>
    %42 = tpu.concatenate %40, %41 in 1 : vector<4x1xf32>, vector<4x511xf32> -> vector<4x512xf32>
    %c1_i32_13 = arith.constant 1 : i32
    %43 = vector.broadcast %c1_i32_13 : i32 to vector<1x512xi32>
    %44 = arith.cmpi sge, %1, %43 : vector<1x512xi32>
    %cst_14 = arith.constant 0.000000e+00 : f32
    %45 = vector.shape_cast %44 : vector<1x512xi1> to vector<1x512xi1>
    %46 = vector.broadcast %45 : vector<1x512xi1> to vector<4x512xi1>
    %47 = vector.broadcast %cst_14 : f32 to vector<4x512xf32>
    %48 = arith.select %46, %42, %47 : vector<4x512xi1>, vector<4x512xf32>
    %49 = vector.extract_strided_slice %6 {offsets = [0, 1], sizes = [4, 511], strides = [1, 1]} : vector<4x512xf32> to vector<4x511xf32>
    %50 = vector.extract_strided_slice %6 {offsets = [0, 0], sizes = [4, 1], strides = [1, 1]} : vector<4x512xf32> to vector<4x1xf32>
    %51 = tpu.concatenate %49, %50 in 1 : vector<4x511xf32>, vector<4x1xf32> -> vector<4x512xf32>
    %c14_i32_15 = arith.constant 14 : i32
    %52 = vector.broadcast %c14_i32_15 : i32 to vector<1x512xi32>
    %53 = arith.cmpi sle, %1, %52 : vector<1x512xi32>
    %cst_16 = arith.constant 0.000000e+00 : f32
    %54 = vector.shape_cast %53 : vector<1x512xi1> to vector<1x512xi1>
    %55 = vector.broadcast %54 : vector<1x512xi1> to vector<4x512xi1>
    %56 = vector.broadcast %cst_16 : f32 to vector<4x512xf32>
    %57 = arith.select %55, %51, %56 : vector<4x512xi1>, vector<4x512xf32>
    %58 = vector.extract_strided_slice %6 {offsets = [0, 15], sizes = [4, 497], strides = [1, 1]} : vector<4x512xf32> to vector<4x497xf32>
    %59 = vector.extract_strided_slice %6 {offsets = [0, 0], sizes = [4, 15], strides = [1, 1]} : vector<4x512xf32> to vector<4x15xf32>
    %60 = tpu.concatenate %58, %59 in 1 : vector<4x497xf32>, vector<4x15xf32> -> vector<4x512xf32>
    %c14_i32_17 = arith.constant 14 : i32
    %61 = vector.broadcast %c14_i32_17 : i32 to vector<1x512xi32>
    %62 = arith.cmpi sle, %0, %61 : vector<1x512xi32>
    %c1_i32_18 = arith.constant 1 : i32
    %63 = vector.broadcast %c1_i32_18 : i32 to vector<1x512xi32>
    %64 = arith.cmpi sge, %1, %63 : vector<1x512xi32>
    %65 = arith.andi %62, %64 : vector<1x512xi1>
    %cst_19 = arith.constant 0.000000e+00 : f32
    %66 = vector.shape_cast %65 : vector<1x512xi1> to vector<1x512xi1>
    %67 = vector.broadcast %66 : vector<1x512xi1> to vector<4x512xi1>
    %68 = vector.broadcast %cst_19 : f32 to vector<4x512xf32>
    %69 = arith.select %67, %60, %68 : vector<4x512xi1>, vector<4x512xf32>
    %70 = vector.extract_strided_slice %6 {offsets = [0, 16], sizes = [4, 496], strides = [1, 1]} : vector<4x512xf32> to vector<4x496xf32>
    %71 = vector.extract_strided_slice %6 {offsets = [0, 0], sizes = [4, 16], strides = [1, 1]} : vector<4x512xf32> to vector<4x16xf32>
    %72 = tpu.concatenate %70, %71 in 1 : vector<4x496xf32>, vector<4x16xf32> -> vector<4x512xf32>
    %c14_i32_20 = arith.constant 14 : i32
    %73 = vector.broadcast %c14_i32_20 : i32 to vector<1x512xi32>
    %74 = arith.cmpi sle, %0, %73 : vector<1x512xi32>
    %cst_21 = arith.constant 0.000000e+00 : f32
    %75 = vector.shape_cast %74 : vector<1x512xi1> to vector<1x512xi1>
    %76 = vector.broadcast %75 : vector<1x512xi1> to vector<4x512xi1>
    %77 = vector.broadcast %cst_21 : f32 to vector<4x512xf32>
    %78 = arith.select %76, %72, %77 : vector<4x512xi1>, vector<4x512xf32>
    %79 = vector.extract_strided_slice %6 {offsets = [0, 17], sizes = [4, 495], strides = [1, 1]} : vector<4x512xf32> to vector<4x495xf32>
    %80 = vector.extract_strided_slice %6 {offsets = [0, 0], sizes = [4, 17], strides = [1, 1]} : vector<4x512xf32> to vector<4x17xf32>
    %81 = tpu.concatenate %79, %80 in 1 : vector<4x495xf32>, vector<4x17xf32> -> vector<4x512xf32>
    %c14_i32_22 = arith.constant 14 : i32
    %82 = vector.broadcast %c14_i32_22 : i32 to vector<1x512xi32>
    %83 = arith.cmpi sle, %0, %82 : vector<1x512xi32>
    %c14_i32_23 = arith.constant 14 : i32
    %84 = vector.broadcast %c14_i32_23 : i32 to vector<1x512xi32>
    %85 = arith.cmpi sle, %1, %84 : vector<1x512xi32>
    %86 = arith.andi %83, %85 : vector<1x512xi1>
    %cst_24 = arith.constant 0.000000e+00 : f32
    %87 = vector.shape_cast %86 : vector<1x512xi1> to vector<1x512xi1>
    %88 = vector.broadcast %87 : vector<1x512xi1> to vector<4x512xi1>
    %89 = vector.broadcast %cst_24 : f32 to vector<4x512xf32>
    %90 = arith.select %88, %81, %89 : vector<4x512xi1>, vector<4x512xf32>
    %91 = tpu.concatenate %18, %27, %39, %48, %6, %57, %69, %78, %90 in 0 : vector<4x512xf32>, vector<4x512xf32>, vector<4x512xf32>, vector<4x512xf32>, vector<4x512xf32>, vector<4x512xf32>, vector<4x512xf32>, vector<4x512xf32>, vector<4x512xf32> -> vector<36x512xf32>
    %c0_25 = arith.constant 0 : index
    %c0_26 = arith.constant 0 : index
    %92 = vector.load %arg3[%c0_25, %c0_26] : memref<4x36xf32, #tpu.memory_space<vmem>>, vector<4x36xf32>
    %cst_27 = arith.constant dense<0.000000e+00> : vector<4x512xf32>
    %93 = tpu.matmul %92, %91, %cst_27 {dimension_numbers = #tpu.dot_dimension_numbers<[1], [0], [0], [1], [0, 0, 1, 1], [], []>} : vector<4x36xf32>, vector<36x512xf32>, vector<4x512xf32> -> vector<4x512xf32>
    %cst_28 = arith.constant dense<0.000000e+00> : vector<4xf32>
    %94 = vector.multi_reduction <add>, %93, %cst_28 [1] : vector<4x512xf32> to vector<4xf32>
    %95 = vector.shape_cast %94 : vector<4xf32> to vector<4x1xf32>
    %cst_29 = arith.constant 0.001953125 : f32
    %96 = vector.broadcast %cst_29 : f32 to vector<4x1xf32>
    %97 = arith.mulf %95, %96 : vector<4x1xf32>
    %98 = arith.mulf %93, %93 : vector<4x512xf32>
    %cst_30 = arith.constant dense<0.000000e+00> : vector<4xf32>
    %99 = vector.multi_reduction <add>, %98, %cst_30 [1] : vector<4x512xf32> to vector<4xf32>
    %100 = vector.shape_cast %99 : vector<4xf32> to vector<4x1xf32>
    %cst_31 = arith.constant 0.001953125 : f32
    %101 = vector.broadcast %cst_31 : f32 to vector<4x1xf32>
    %102 = arith.mulf %100, %101 : vector<4x1xf32>
    %103 = arith.mulf %97, %97 : vector<4x1xf32>
    %104 = arith.subf %102, %103 : vector<4x1xf32>
    %cst_32 = arith.constant 0.000000e+00 : f32
    %105 = vector.broadcast %cst_32 : f32 to vector<4x1xf32>
    %106 = arith.maximumf %104, %105 : vector<4x1xf32>
    %c0_33 = arith.constant 0 : index
    %c0_34 = arith.constant 0 : index
    %107 = vector.load %arg4[%c0_33, %c0_34] : memref<4x1xf32, #tpu.memory_space<vmem>>, vector<4x1xf32>
    %cst_35 = arith.constant 9.99999974E-6 : f32
    %108 = vector.broadcast %cst_35 : f32 to vector<4x1xf32>
    %109 = arith.addf %106, %108 : vector<4x1xf32>
    %110 = math.rsqrt %109 : vector<4x1xf32>
    %111 = arith.mulf %107, %110 : vector<4x1xf32>
    %c0_36 = arith.constant 0 : index
    %c0_37 = arith.constant 0 : index
    %112 = vector.load %arg5[%c0_36, %c0_37] : memref<4x1xf32, #tpu.memory_space<vmem>>, vector<4x1xf32>
    %113 = arith.mulf %97, %111 : vector<4x1xf32>
    %114 = arith.subf %112, %113 : vector<4x1xf32>
    %115 = vector.broadcast %111 : vector<4x1xf32> to vector<4x512xf32>
    %116 = arith.mulf %93, %115 : vector<4x512xf32>
    %117 = vector.broadcast %114 : vector<4x1xf32> to vector<4x512xf32>
    %118 = arith.addf %116, %117 : vector<4x512xf32>
    %cst_38 = arith.constant 0.000000e+00 : f32
    %119 = vector.broadcast %cst_38 : f32 to vector<4x512xf32>
    %120 = arith.maximumf %118, %119 : vector<4x512xf32>
    %121 = vector.extract_strided_slice %120 {offsets = [0, 495], sizes = [4, 17], strides = [1, 1]} : vector<4x512xf32> to vector<4x17xf32>
    %122 = vector.extract_strided_slice %120 {offsets = [0, 0], sizes = [4, 495], strides = [1, 1]} : vector<4x512xf32> to vector<4x495xf32>
    %123 = tpu.concatenate %121, %122 in 1 : vector<4x17xf32>, vector<4x495xf32> -> vector<4x512xf32>
    %c1_i32_39 = arith.constant 1 : i32
    %124 = vector.broadcast %c1_i32_39 : i32 to vector<1x512xi32>
    %125 = arith.cmpi sge, %0, %124 : vector<1x512xi32>
    %c1_i32_40 = arith.constant 1 : i32
    %126 = vector.broadcast %c1_i32_40 : i32 to vector<1x512xi32>
    %127 = arith.cmpi sge, %1, %126 : vector<1x512xi32>
    %128 = arith.andi %125, %127 : vector<1x512xi1>
    %cst_41 = arith.constant 0.000000e+00 : f32
    %129 = vector.shape_cast %128 : vector<1x512xi1> to vector<1x512xi1>
    %130 = vector.broadcast %129 : vector<1x512xi1> to vector<4x512xi1>
    %131 = vector.broadcast %cst_41 : f32 to vector<4x512xf32>
    %132 = arith.select %130, %123, %131 : vector<4x512xi1>, vector<4x512xf32>
    %133 = vector.extract_strided_slice %120 {offsets = [0, 496], sizes = [4, 16], strides = [1, 1]} : vector<4x512xf32> to vector<4x16xf32>
    %134 = vector.extract_strided_slice %120 {offsets = [0, 0], sizes = [4, 496], strides = [1, 1]} : vector<4x512xf32> to vector<4x496xf32>
    %135 = tpu.concatenate %133, %134 in 1 : vector<4x16xf32>, vector<4x496xf32> -> vector<4x512xf32>
    %c1_i32_42 = arith.constant 1 : i32
    %136 = vector.broadcast %c1_i32_42 : i32 to vector<1x512xi32>
    %137 = arith.cmpi sge, %0, %136 : vector<1x512xi32>
    %cst_43 = arith.constant 0.000000e+00 : f32
    %138 = vector.shape_cast %137 : vector<1x512xi1> to vector<1x512xi1>
    %139 = vector.broadcast %138 : vector<1x512xi1> to vector<4x512xi1>
    %140 = vector.broadcast %cst_43 : f32 to vector<4x512xf32>
    %141 = arith.select %139, %135, %140 : vector<4x512xi1>, vector<4x512xf32>
    %142 = vector.extract_strided_slice %120 {offsets = [0, 497], sizes = [4, 15], strides = [1, 1]} : vector<4x512xf32> to vector<4x15xf32>
    %143 = vector.extract_strided_slice %120 {offsets = [0, 0], sizes = [4, 497], strides = [1, 1]} : vector<4x512xf32> to vector<4x497xf32>
    %144 = tpu.concatenate %142, %143 in 1 : vector<4x15xf32>, vector<4x497xf32> -> vector<4x512xf32>
    %c1_i32_44 = arith.constant 1 : i32
    %145 = vector.broadcast %c1_i32_44 : i32 to vector<1x512xi32>
    %146 = arith.cmpi sge, %0, %145 : vector<1x512xi32>
    %c14_i32_45 = arith.constant 14 : i32
    %147 = vector.broadcast %c14_i32_45 : i32 to vector<1x512xi32>
    %148 = arith.cmpi sle, %1, %147 : vector<1x512xi32>
    %149 = arith.andi %146, %148 : vector<1x512xi1>
    %cst_46 = arith.constant 0.000000e+00 : f32
    %150 = vector.shape_cast %149 : vector<1x512xi1> to vector<1x512xi1>
    %151 = vector.broadcast %150 : vector<1x512xi1> to vector<4x512xi1>
    %152 = vector.broadcast %cst_46 : f32 to vector<4x512xf32>
    %153 = arith.select %151, %144, %152 : vector<4x512xi1>, vector<4x512xf32>
    %154 = vector.extract_strided_slice %120 {offsets = [0, 511], sizes = [4, 1], strides = [1, 1]} : vector<4x512xf32> to vector<4x1xf32>
    %155 = vector.extract_strided_slice %120 {offsets = [0, 0], sizes = [4, 511], strides = [1, 1]} : vector<4x512xf32> to vector<4x511xf32>
    %156 = tpu.concatenate %154, %155 in 1 : vector<4x1xf32>, vector<4x511xf32> -> vector<4x512xf32>
    %c1_i32_47 = arith.constant 1 : i32
    %157 = vector.broadcast %c1_i32_47 : i32 to vector<1x512xi32>
    %158 = arith.cmpi sge, %1, %157 : vector<1x512xi32>
    %cst_48 = arith.constant 0.000000e+00 : f32
    %159 = vector.shape_cast %158 : vector<1x512xi1> to vector<1x512xi1>
    %160 = vector.broadcast %159 : vector<1x512xi1> to vector<4x512xi1>
    %161 = vector.broadcast %cst_48 : f32 to vector<4x512xf32>
    %162 = arith.select %160, %156, %161 : vector<4x512xi1>, vector<4x512xf32>
    %163 = vector.extract_strided_slice %120 {offsets = [0, 1], sizes = [4, 511], strides = [1, 1]} : vector<4x512xf32> to vector<4x511xf32>
    %164 = vector.extract_strided_slice %120 {offsets = [0, 0], sizes = [4, 1], strides = [1, 1]} : vector<4x512xf32> to vector<4x1xf32>
    %165 = tpu.concatenate %163, %164 in 1 : vector<4x511xf32>, vector<4x1xf32> -> vector<4x512xf32>
    %c14_i32_49 = arith.constant 14 : i32
    %166 = vector.broadcast %c14_i32_49 : i32 to vector<1x512xi32>
    %167 = arith.cmpi sle, %1, %166 : vector<1x512xi32>
    %cst_50 = arith.constant 0.000000e+00 : f32
    %168 = vector.shape_cast %167 : vector<1x512xi1> to vector<1x512xi1>
    %169 = vector.broadcast %168 : vector<1x512xi1> to vector<4x512xi1>
    %170 = vector.broadcast %cst_50 : f32 to vector<4x512xf32>
    %171 = arith.select %169, %165, %170 : vector<4x512xi1>, vector<4x512xf32>
    %172 = vector.extract_strided_slice %120 {offsets = [0, 15], sizes = [4, 497], strides = [1, 1]} : vector<4x512xf32> to vector<4x497xf32>
    %173 = vector.extract_strided_slice %120 {offsets = [0, 0], sizes = [4, 15], strides = [1, 1]} : vector<4x512xf32> to vector<4x15xf32>
    %174 = tpu.concatenate %172, %173 in 1 : vector<4x497xf32>, vector<4x15xf32> -> vector<4x512xf32>
    %c14_i32_51 = arith.constant 14 : i32
    %175 = vector.broadcast %c14_i32_51 : i32 to vector<1x512xi32>
    %176 = arith.cmpi sle, %0, %175 : vector<1x512xi32>
    %c1_i32_52 = arith.constant 1 : i32
    %177 = vector.broadcast %c1_i32_52 : i32 to vector<1x512xi32>
    %178 = arith.cmpi sge, %1, %177 : vector<1x512xi32>
    %179 = arith.andi %176, %178 : vector<1x512xi1>
    %cst_53 = arith.constant 0.000000e+00 : f32
    %180 = vector.shape_cast %179 : vector<1x512xi1> to vector<1x512xi1>
    %181 = vector.broadcast %180 : vector<1x512xi1> to vector<4x512xi1>
    %182 = vector.broadcast %cst_53 : f32 to vector<4x512xf32>
    %183 = arith.select %181, %174, %182 : vector<4x512xi1>, vector<4x512xf32>
    %184 = vector.extract_strided_slice %120 {offsets = [0, 16], sizes = [4, 496], strides = [1, 1]} : vector<4x512xf32> to vector<4x496xf32>
    %185 = vector.extract_strided_slice %120 {offsets = [0, 0], sizes = [4, 16], strides = [1, 1]} : vector<4x512xf32> to vector<4x16xf32>
    %186 = tpu.concatenate %184, %185 in 1 : vector<4x496xf32>, vector<4x16xf32> -> vector<4x512xf32>
    %c14_i32_54 = arith.constant 14 : i32
    %187 = vector.broadcast %c14_i32_54 : i32 to vector<1x512xi32>
    %188 = arith.cmpi sle, %0, %187 : vector<1x512xi32>
    %cst_55 = arith.constant 0.000000e+00 : f32
    %189 = vector.shape_cast %188 : vector<1x512xi1> to vector<1x512xi1>
    %190 = vector.broadcast %189 : vector<1x512xi1> to vector<4x512xi1>
    %191 = vector.broadcast %cst_55 : f32 to vector<4x512xf32>
    %192 = arith.select %190, %186, %191 : vector<4x512xi1>, vector<4x512xf32>
    %193 = vector.extract_strided_slice %120 {offsets = [0, 17], sizes = [4, 495], strides = [1, 1]} : vector<4x512xf32> to vector<4x495xf32>
    %194 = vector.extract_strided_slice %120 {offsets = [0, 0], sizes = [4, 17], strides = [1, 1]} : vector<4x512xf32> to vector<4x17xf32>
    %195 = tpu.concatenate %193, %194 in 1 : vector<4x495xf32>, vector<4x17xf32> -> vector<4x512xf32>
    %c14_i32_56 = arith.constant 14 : i32
    %196 = vector.broadcast %c14_i32_56 : i32 to vector<1x512xi32>
    %197 = arith.cmpi sle, %0, %196 : vector<1x512xi32>
    %c14_i32_57 = arith.constant 14 : i32
    %198 = vector.broadcast %c14_i32_57 : i32 to vector<1x512xi32>
    %199 = arith.cmpi sle, %1, %198 : vector<1x512xi32>
    %200 = arith.andi %197, %199 : vector<1x512xi1>
    %cst_58 = arith.constant 0.000000e+00 : f32
    %201 = vector.shape_cast %200 : vector<1x512xi1> to vector<1x512xi1>
    %202 = vector.broadcast %201 : vector<1x512xi1> to vector<4x512xi1>
    %203 = vector.broadcast %cst_58 : f32 to vector<4x512xf32>
    %204 = arith.select %202, %195, %203 : vector<4x512xi1>, vector<4x512xf32>
    %205 = tpu.concatenate %132, %141, %153, %162, %120, %171, %183, %192, %204 in 0 : vector<4x512xf32>, vector<4x512xf32>, vector<4x512xf32>, vector<4x512xf32>, vector<4x512xf32>, vector<4x512xf32>, vector<4x512xf32>, vector<4x512xf32>, vector<4x512xf32> -> vector<36x512xf32>
    %c0_59 = arith.constant 0 : index
    %c0_60 = arith.constant 0 : index
    %206 = vector.load %arg6[%c0_59, %c0_60] : memref<4x36xf32, #tpu.memory_space<vmem>>, vector<4x36xf32>
    %cst_61 = arith.constant dense<0.000000e+00> : vector<4x512xf32>
    %207 = tpu.matmul %206, %205, %cst_61 {dimension_numbers = #tpu.dot_dimension_numbers<[1], [0], [0], [1], [0, 0, 1, 1], [], []>} : vector<4x36xf32>, vector<36x512xf32>, vector<4x512xf32> -> vector<4x512xf32>
    %cst_62 = arith.constant dense<0.000000e+00> : vector<4xf32>
    %208 = vector.multi_reduction <add>, %207, %cst_62 [1] : vector<4x512xf32> to vector<4xf32>
    %209 = vector.shape_cast %208 : vector<4xf32> to vector<4x1xf32>
    %cst_63 = arith.constant 0.001953125 : f32
    %210 = vector.broadcast %cst_63 : f32 to vector<4x1xf32>
    %211 = arith.mulf %209, %210 : vector<4x1xf32>
    %212 = arith.mulf %207, %207 : vector<4x512xf32>
    %cst_64 = arith.constant dense<0.000000e+00> : vector<4xf32>
    %213 = vector.multi_reduction <add>, %212, %cst_64 [1] : vector<4x512xf32> to vector<4xf32>
    %214 = vector.shape_cast %213 : vector<4xf32> to vector<4x1xf32>
    %cst_65 = arith.constant 0.001953125 : f32
    %215 = vector.broadcast %cst_65 : f32 to vector<4x1xf32>
    %216 = arith.mulf %214, %215 : vector<4x1xf32>
    %217 = arith.mulf %211, %211 : vector<4x1xf32>
    %218 = arith.subf %216, %217 : vector<4x1xf32>
    %cst_66 = arith.constant 0.000000e+00 : f32
    %219 = vector.broadcast %cst_66 : f32 to vector<4x1xf32>
    %220 = arith.maximumf %218, %219 : vector<4x1xf32>
    %c0_67 = arith.constant 0 : index
    %c0_68 = arith.constant 0 : index
    %221 = vector.load %arg7[%c0_67, %c0_68] : memref<4x1xf32, #tpu.memory_space<vmem>>, vector<4x1xf32>
    %cst_69 = arith.constant 9.99999974E-6 : f32
    %222 = vector.broadcast %cst_69 : f32 to vector<4x1xf32>
    %223 = arith.addf %220, %222 : vector<4x1xf32>
    %224 = math.rsqrt %223 : vector<4x1xf32>
    %225 = arith.mulf %221, %224 : vector<4x1xf32>
    %c0_70 = arith.constant 0 : index
    %c0_71 = arith.constant 0 : index
    %226 = vector.load %arg8[%c0_70, %c0_71] : memref<4x1xf32, #tpu.memory_space<vmem>>, vector<4x1xf32>
    %227 = arith.mulf %211, %225 : vector<4x1xf32>
    %228 = arith.subf %226, %227 : vector<4x1xf32>
    %229 = vector.broadcast %225 : vector<4x1xf32> to vector<4x512xf32>
    %230 = arith.mulf %207, %229 : vector<4x512xf32>
    %231 = vector.broadcast %228 : vector<4x1xf32> to vector<4x512xf32>
    %232 = arith.addf %230, %231 : vector<4x512xf32>
    %233 = arith.addf %232, %6 : vector<4x512xf32>
    %cst_72 = arith.constant 0.000000e+00 : f32
    %234 = vector.broadcast %cst_72 : f32 to vector<4x512xf32>
    %235 = arith.maximumf %233, %234 : vector<4x512xf32>
    %236 = vector.extract_strided_slice %235 {offsets = [0, 0], sizes = [4, 256], strides = [1, 1]} : vector<4x512xf32> to vector<4x256xf32>
    %c0_73 = arith.constant 0 : index
    %c0_74 = arith.constant 0 : index
    %c0_75 = arith.constant 0 : index
    %237 = vector.load %arg9[%c0_73, %c0_74, %c0_75] : memref<2x4x256xf32, #tpu.memory_space<vmem>>, vector<1x4x256xf32>
    %238 = vector.shape_cast %237 : vector<1x4x256xf32> to vector<4x256xf32>
    %239 = vector.shape_cast %236 : vector<4x256xf32> to vector<1x4x256xf32>
    tpu.vector_store %arg9[%c0_73, %c0_74, %c0_75], %239 {strides = array<i32>} : memref<2x4x256xf32, #tpu.memory_space<vmem>>, vector<1x4x256xf32>,
    %240 = vector.extract_strided_slice %235 {offsets = [0, 256], sizes = [4, 256], strides = [1, 1]} : vector<4x512xf32> to vector<4x256xf32>
    %c1_76 = arith.constant 1 : index
    %c0_77 = arith.constant 0 : index
    %c0_78 = arith.constant 0 : index
    %241 = vector.load %arg9[%c1_76, %c0_77, %c0_78] : memref<2x4x256xf32, #tpu.memory_space<vmem>>, vector<1x4x256xf32>
    %242 = vector.shape_cast %241 : vector<1x4x256xf32> to vector<4x256xf32>
    %243 = vector.shape_cast %240 : vector<4x256xf32> to vector<1x4x256xf32>
    tpu.vector_store %arg9[%c1_76, %c0_77, %c0_78], %243 {strides = array<i32>} : memref<2x4x256xf32, #tpu.memory_space<vmem>>, vector<1x4x256xf32>,
    return
  }
}

</mosaic_0001>

<llo_original>
// kernel: res_layer_forward.1
$region0: #{res_layer_forward.1}
  #allocation0 [shape = 'u32[]', space=smem, size = 0x4, offset = 0x4, fixed_abs, tag = 'smem constant byte address 0x4 - core index']
  #allocation1 [shape = 'u32[144,128]{1,0:T(1,128)}', space=vmem, size = 0x12000, scoped, tag = 'internal scratch']
  %s0 = inlined_call_operand.vmem [shape: f32[2,4,256], index: 0, kind: input, shape index: {}]
  %s1 = inlined_call_operand.vmem [shape: s32[1,512], index: 1, kind: input, shape index: {}]
  %s2 = inlined_call_operand.vmem [shape: s32[1,512], index: 2, kind: input, shape index: {}]
  %s3 = inlined_call_operand.vmem [shape: f32[4,36], index: 3, kind: input, shape index: {}]
  %s4 = inlined_call_operand.vmem [shape: f32[4,1], index: 4, kind: input, shape index: {}]
  %s5 = inlined_call_operand.vmem [shape: f32[4,1], index: 5, kind: input, shape index: {}]
  %s6 = inlined_call_operand.vmem [shape: f32[4,36], index: 6, kind: input, shape index: {}]
  %s7 = inlined_call_operand.vmem [shape: f32[4,1], index: 7, kind: input, shape index: {}]
  %s8 = inlined_call_operand.vmem [shape: f32[4,1], index: 8, kind: input, shape index: {}]
  %s9 = inlined_call_operand.vmem [shape: f32[2,4,256], index: 9, kind: output, shape index: {}]
  %s10 = sld [smem:[#allocation0]]
  $region46: #{res_layer_forward.1} parent=0
    _
  %s12 = ssub.s32 1, %s10
  %s13 = scalar_select 0, %s12, %s10
  // Predicated region
  $region2: #{res_layer_forward.1} parent=0 // pred_check
    _
  $region3: #{res_layer_forward.1} parent=0 // pred_check_branch
    %15 = sbr.rel (0) target = $region5
  $region4: #{res_layer_forward.1} parent=0 // pred_region
    _
  $region5: #{res_layer_forward.1} parent=0 // pred_fallthru
    _
  // Predicated region
  $region6: #{res_layer_forward.1} parent=0 // pred_check
    _
  $region7: #{res_layer_forward.1} parent=0 // pred_check_branch
    %17 = sbr.rel (0) target = $region9
  $region8: #{res_layer_forward.1} parent=0 // pred_region
    _
  $region9: #{res_layer_forward.1} parent=0 // pred_fallthru
    _
  // Predicated region
  $region10: #{res_layer_forward.1} parent=0 // pred_check
    _
  $region11: #{res_layer_forward.1} parent=0 // pred_check_branch
    %19 = sbr.rel (0) target = $region13
  $region12: #{res_layer_forward.1} parent=0 // pred_region
    _
  $region13: #{res_layer_forward.1} parent=0 // pred_fallthru
    _
  // Predicated region
  $region14: #{res_layer_forward.1} parent=0 // pred_check
    _
  $region15: #{res_layer_forward.1} parent=0 // pred_check_branch
    %21 = sbr.rel (0) target = $region17
  $region16: #{res_layer_forward.1} parent=0 // pred_region
    _
  $region17: #{res_layer_forward.1} parent=0 // pred_fallthru
    _
  // Predicated region
  $region18: #{res_layer_forward.1} parent=0 // pred_check
    _
  $region19: #{res_layer_forward.1} parent=0 // pred_check_branch
    %23 = sbr.rel (0) target = $region21
  $region20: #{res_layer_forward.1} parent=0 // pred_region
    _
  $region21: #{res_layer_forward.1} parent=0 // pred_fallthru
    _
  // Predicated region
  $region22: #{res_layer_forward.1} parent=0 // pred_check
    _
  $region23: #{res_layer_forward.1} parent=0 // pred_check_branch
    %25 = sbr.rel (0) target = $region25
  $region24: #{res_layer_forward.1} parent=0 // pred_region
    _
  $region25: #{res_layer_forward.1} parent=0 // pred_fallthru
    _
  // Predicated region
  $region26: #{res_layer_forward.1} parent=0 // pred_check
    _
  $region27: #{res_layer_forward.1} parent=0 // pred_check_branch
    %27 = sbr.rel (0) target = $region29
  $region28: #{res_layer_forward.1} parent=0 // pred_region
    _
  $region29: #{res_layer_forward.1} parent=0 // pred_fallthru
    _
  // Predicated region
  $region30: #{res_layer_forward.1} parent=0 // pred_check
    _
  $region31: #{res_layer_forward.1} parent=0 // pred_check_branch
    %29 = sbr.rel (0) target = $region33
  $region32: #{res_layer_forward.1} parent=0 // pred_region
    _
  $region33: #{res_layer_forward.1} parent=0 // pred_fallthru
    _
  // Predicated region
  $region34: #{res_layer_forward.1} parent=0 // pred_check
    _
  $region35: #{res_layer_forward.1} parent=0 // pred_check_branch
    %31 = sbr.rel (0) target = $region37
  $region36: #{res_layer_forward.1} parent=0 // pred_region
    _
  $region37: #{res_layer_forward.1} parent=0 // pred_fallthru
    _
  %v32 = vld [vmem:[%s1] sm:$0xf]
  %v33 = vld [vmem:[%s2] sm:$0xf]
  %v34 = vld [vmem:[%s0] sm:$0xff]
  %s35 = scalar_lea.vmem %s0, 8
  %v36 = vld [vmem:[%s35] sm:$0xff]
  %v38 = vcombine.high %v34, %v34
  %v41 = vcombine.high %v36, %v36
  %43 = vrot.lane.b32.xlu0 %v41, 17
  %v44 = vpop.permute.xlu0 %43
  %46 = vrot.lane.b32.xlu0 %v34, 17
  %v47 = vpop.permute.xlu0 %46
  %48 = vrot.lane.b32.xlu0 %v38, 17
  %v49 = vpop.permute.xlu0 %48
  %50 = vrot.lane.b32.xlu0 %v36, 17
  %v51 = vpop.permute.xlu0 %50
  %vm52 = vcmask 138240
  %v53 = vsel %vm52, %v47, %v49
  %v54 = vsel %vm52, %v49, %v51
  %v55 = vsel %vm52, %v51, %v44
  %v60 = vsel %vm52, %v44, %v47
  %vm61 = vcmp.ge.s32.totalorder %v32, 1
  %vm62 = vcmp.ge.s32.totalorder %v33, 1
  %vm63 = vmand %vm61, %vm62
  %v64 = vsel %vm63, 1, 0
  %v65 = vlaneseq
  %v66 = vshrl.u32 %v65, 7
  %v67 = vsub.s32 0, %v66
  %v68 = vrot.slane %v64, %v67
  %v69 = vlaneseq
  %v70 = vshrl.u32 %v69, 7
  %v71 = vsub.s32 1, %v70
  %v72 = vrot.slane %v64, %v71
  %v73 = vlaneseq
  %v74 = vshrl.u32 %v73, 7
  %v75 = vsub.s32 2, %v74
  %v76 = vrot.slane %v64, %v75
  %v77 = vlaneseq
  %v78 = vshrl.u32 %v77, 7
  %v79 = vsub.s32 3, %v78
  %v80 = vrot.slane %v64, %v79
  %vm81 = vcmp.eq.s32.totalorder %v68, 1
  %vm82 = vcmp.eq.s32.totalorder %v72, 1
  %vm83 = vcmp.eq.s32.totalorder %v76, 1
  %vm84 = vcmp.eq.s32.totalorder %v80, 1
  %v85 = vsel %vm81, %v60, 0.0
  %v86 = vsel %vm82, %v53, 0.0
  %v87 = vsel %vm83, %v54, 0.0
  %v88 = vsel %vm84, %v55, 0.0
  %89 = vrot.lane.b32.xlu0 %v41, 16
  %v90 = vpop.permute.xlu0 %89
  %92 = vrot.lane.b32.xlu0 %v34, 16
  %v93 = vpop.permute.xlu0 %92
  %94 = vrot.lane.b32.xlu0 %v38, 16
  %v95 = vpop.permute.xlu0 %94
  %96 = vrot.lane.b32.xlu0 %v36, 16
  %v97 = vpop.permute.xlu0 %96
  %vm98 = vcmask 130048
  %v99 = vsel %vm98, %v93, %v95
  %v100 = vsel %vm98, %v95, %v97
  %v101 = vsel %vm98, %v97, %v90
  %v106 = vsel %vm98, %v90, %v93
  %v107 = vsel %vm61, 1, 0
  %v108 = vlaneseq
  %v109 = vshrl.u32 %v108, 7
  %v110 = vsub.s32 0, %v109
  %v111 = vrot.slane %v107, %v110
  %v112 = vlaneseq
  %v113 = vshrl.u32 %v112, 7
  %v114 = vsub.s32 1, %v113
  %v115 = vrot.slane %v107, %v114
  %v116 = vlaneseq
  %v117 = vshrl.u32 %v116, 7
  %v118 = vsub.s32 2, %v117
  %v119 = vrot.slane %v107, %v118
  %v120 = vlaneseq
  %v121 = vshrl.u32 %v120, 7
  %v122 = vsub.s32 3, %v121
  %v123 = vrot.slane %v107, %v122
  %vm124 = vcmp.eq.s32.totalorder %v111, 1
  %vm125 = vcmp.eq.s32.totalorder %v115, 1
  %vm126 = vcmp.eq.s32.totalorder %v119, 1
  %vm127 = vcmp.eq.s32.totalorder %v123, 1
  %v128 = vsel %vm124, %v106, 0.0
  %v129 = vsel %vm125, %v99, 0.0
  %v130 = vsel %vm126, %v100, 0.0
  %v131 = vsel %vm127, %v101, 0.0
  %132 = vrot.lane.b32.xlu0 %v41, 15
  %v133 = vpop.permute.xlu0 %132
  %135 = vrot.lane.b32.xlu0 %v34, 15
  %v136 = vpop.permute.xlu0 %135
  %137 = vrot.lane.b32.xlu0 %v38, 15
  %v138 = vpop.permute.xlu0 %137
  %139 = vrot.lane.b32.xlu0 %v36, 15
  %v140 = vpop.permute.xlu0 %139
  %vm141 = vcmask 121856
  %v142 = vsel %vm141, %v136, %v138
  %v143 = vsel %vm141, %v138, %v140
  %v144 = vsel %vm141, %v140, %v133
  %v149 = vsel %vm141, %v133, %v136
  %vm150 = vcmp.le.s32.totalorder %v33, 14
  %vm151 = vmand %vm61, %vm150
  %v152 = vsel %vm151, 1, 0
  %v153 = vlaneseq
  %v154 = vshrl.u32 %v153, 7
  %v155 = vsub.s32 0, %v154
  %v156 = vrot.slane %v152, %v155
  %v157 = vlaneseq
  %v158 = vshrl.u32 %v157, 7
  %v159 = vsub.s32 1, %v158
  %v160 = vrot.slane %v152, %v159
  %v161 = vlaneseq
  %v162 = vshrl.u32 %v161, 7
  %v163 = vsub.s32 2, %v162
  %v164 = vrot.slane %v152, %v163
  %v165 = vlaneseq
  %v166 = vshrl.u32 %v165, 7
  %v167 = vsub.s32 3, %v166
  %v168 = vrot.slane %v152, %v167
  %vm169 = vcmp.eq.s32.totalorder %v156, 1
  %vm170 = vcmp.eq.s32.totalorder %v160, 1
  %vm171 = vcmp.eq.s32.totalorder %v164, 1
  %vm172 = vcmp.eq.s32.totalorder %v168, 1
  %v173 = vsel %vm169, %v149, 0.0
  %v174 = vsel %vm170, %v142, 0.0
  %v175 = vsel %vm171, %v143, 0.0
  %v176 = vsel %vm172, %v144, 0.0
  %177 = vrot.lane.b32.xlu0 %v41, 1
  %v178 = vpop.permute.xlu0 %177
  %180 = vrot.lane.b32.xlu0 %v34, 1
  %v181 = vpop.permute.xlu0 %180
  %182 = vrot.lane.b32.xlu0 %v38, 1
  %v183 = vpop.permute.xlu0 %182
  %184 = vrot.lane.b32.xlu0 %v36, 1
  %v185 = vpop.permute.xlu0 %184
  %vm186 = vcmask 7168
  %v187 = vsel %vm186, %v181, %v183
  %v188 = vsel %vm186, %v183, %v185
  %v189 = vsel %vm186, %v185, %v178
  %v194 = vsel %vm186, %v178, %v181
  %v195 = vsel %vm62, 1, 0
  %v196 = vlaneseq
  %v197 = vshrl.u32 %v196, 7
  %v198 = vsub.s32 0, %v197
  %v199 = vrot.slane %v195, %v198
  %v200 = vlaneseq
  %v201 = vshrl.u32 %v200, 7
  %v202 = vsub.s32 1, %v201
  %v203 = vrot.slane %v195, %v202
  %v204 = vlaneseq
  %v205 = vshrl.u32 %v204, 7
  %v206 = vsub.s32 2, %v205
  %v207 = vrot.slane %v195, %v206
  %v208 = vlaneseq
  %v209 = vshrl.u32 %v208, 7
  %v210 = vsub.s32 3, %v209
  %v211 = vrot.slane %v195, %v210
  %vm212 = vcmp.eq.s32.totalorder %v199, 1
  %vm213 = vcmp.eq.s32.totalorder %v203, 1
  %vm214 = vcmp.eq.s32.totalorder %v207, 1
  %vm215 = vcmp.eq.s32.totalorder %v211, 1
  %v216 = vsel %vm212, %v194, 0.0
  %v217 = vsel %vm213, %v187, 0.0
  %v218 = vsel %vm214, %v188, 0.0
  %v219 = vsel %vm215, %v189, 0.0
  %220 = vrot.lane.b32.xlu0 %v34, 127
  %v221 = vpop.permute.xlu0 %220
  %222 = vrot.lane.b32.xlu0 %v38, 127
  %v223 = vpop.permute.xlu0 %222
  %224 = vrot.lane.b32.xlu0 %v36, 127
  %v225 = vpop.permute.xlu0 %224
  %226 = vrot.lane.b32.xlu0 %v41, 127
  %v227 = vpop.permute.xlu0 %226
  %vm228 = vcmask 1039360
  %v229 = vsel %vm228, %v221, %v223
  %v230 = vsel %vm228, %v223, %v225
  %v231 = vsel %vm228, %v225, %v227
  %v237 = vsel %vm228, %v227, %v221
  %v238 = vsel %vm150, 1, 0
  %v239 = vlaneseq
  %v240 = vshrl.u32 %v239, 7
  %v241 = vsub.s32 0, %v240
  %v242 = vrot.slane %v238, %v241
  %v243 = vlaneseq
  %v244 = vshrl.u32 %v243, 7
  %v245 = vsub.s32 1, %v244
  %v246 = vrot.slane %v238, %v245
  %v247 = vlaneseq
  %v248 = vshrl.u32 %v247, 7
  %v249 = vsub.s32 2, %v248
  %v250 = vrot.slane %v238, %v249
  %v251 = vlaneseq
  %v252 = vshrl.u32 %v251, 7
  %v253 = vsub.s32 3, %v252
  %v254 = vrot.slane %v238, %v253
  %vm255 = vcmp.eq.s32.totalorder %v242, 1
  %vm256 = vcmp.eq.s32.totalorder %v246, 1
  %vm257 = vcmp.eq.s32.totalorder %v250, 1
  %vm258 = vcmp.eq.s32.totalorder %v254, 1
  %v259 = vsel %vm255, %v229, 0.0
  %v260 = vsel %vm256, %v230, 0.0
  %v261 = vsel %vm257, %v231, 0.0
  %v262 = vsel %vm258, %v237, 0.0
  %263 = vrot.lane.b32.xlu0 %v34, 113
  %v264 = vpop.permute.xlu0 %263
  %265 = vrot.lane.b32.xlu0 %v38, 113
  %v266 = vpop.permute.xlu0 %265
  %267 = vrot.lane.b32.xlu0 %v36, 113
  %v268 = vpop.permute.xlu0 %267
  %269 = vrot.lane.b32.xlu0 %v41, 113
  %v270 = vpop.permute.xlu0 %269
  %vm271 = vcmask 924672
  %v272 = vsel %vm271, %v264, %v266
  %v273 = vsel %vm271, %v266, %v268
  %v274 = vsel %vm271, %v268, %v270
  %v280 = vsel %vm271, %v270, %v264
  %vm281 = vcmp.le.s32.totalorder %v32, 14
  %vm282 = vmand %vm281, %vm62
  %v283 = vsel %vm282, 1, 0
  %v284 = vlaneseq
  %v285 = vshrl.u32 %v284, 7
  %v286 = vsub.s32 0, %v285
  %v287 = vrot.slane %v283, %v286
  %v288 = vlaneseq
  %v289 = vshrl.u32 %v288, 7
  %v290 = vsub.s32 1, %v289
  %v291 = vrot.slane %v283, %v290
  %v292 = vlaneseq
  %v293 = vshrl.u32 %v292, 7
  %v294 = vsub.s32 2, %v293
  %v295 = vrot.slane %v283, %v294
  %v296 = vlaneseq
  %v297 = vshrl.u32 %v296, 7
  %v298 = vsub.s32 3, %v297
  %v299 = vrot.slane %v283, %v298
  %vm300 = vcmp.eq.s32.totalorder %v287, 1
  %vm301 = vcmp.eq.s32.totalorder %v291, 1
  %vm302 = vcmp.eq.s32.totalorder %v295, 1
  %vm303 = vcmp.eq.s32.totalorder %v299, 1
  %v304 = vsel %vm300, %v272, 0.0
  %v305 = vsel %vm301, %v273, 0.0
  %v306 = vsel %vm302, %v274, 0.0
  %v307 = vsel %vm303, %v280, 0.0
  %308 = vrot.lane.b32.xlu0 %v34, 112
  %v309 = vpop.permute.xlu0 %308
  %310 = vrot.lane.b32.xlu0 %v38, 112
  %v311 = vpop.permute.xlu0 %310
  %312 = vrot.lane.b32.xlu0 %v36, 112
  %v313 = vpop.permute.xlu0 %312
  %314 = vrot.lane.b32.xlu0 %v41, 112
  %v315 = vpop.permute.xlu0 %314
  %vm316 = vcmask 916480
  %v317 = vsel %vm316, %v309, %v311
  %v318 = vsel %vm316, %v311, %v313
  %v319 = vsel %vm316, %v313, %v315
  %v325 = vsel %vm316, %v315, %v309
  %v326 = vsel %vm281, 1, 0
  %v327 = vlaneseq
  %v328 = vshrl.u32 %v327, 7
  %v329 = vsub.s32 0, %v328
  %v330 = vrot.slane %v326, %v329
  %v331 = vlaneseq
  %v332 = vshrl.u32 %v331, 7
  %v333 = vsub.s32 1, %v332
  %v334 = vrot.slane %v326, %v333
  %v335 = vlaneseq
  %v336 = vshrl.u32 %v335, 7
  %v337 = vsub.s32 2, %v336
  %v338 = vrot.slane %v326, %v337
  %v339 = vlaneseq
  %v340 = vshrl.u32 %v339, 7
  %v341 = vsub.s32 3, %v340
  %v342 = vrot.slane %v326, %v341
  %vm343 = vcmp.eq.s32.totalorder %v330, 1
  %vm344 = vcmp.eq.s32.totalorder %v334, 1
  %vm345 = vcmp.eq.s32.totalorder %v338, 1
  %vm346 = vcmp.eq.s32.totalorder %v342, 1
  %v347 = vsel %vm343, %v317, 0.0
  %v348 = vsel %vm344, %v318, 0.0
  %v349 = vsel %vm345, %v319, 0.0
  %v350 = vsel %vm346, %v325, 0.0
  %351 = vrot.lane.b32.xlu0 %v34, 111
  %v352 = vpop.permute.xlu0 %351
  %353 = vrot.lane.b32.xlu0 %v38, 111
  %v354 = vpop.permute.xlu0 %353
  %355 = vrot.lane.b32.xlu0 %v36, 111
  %v356 = vpop.permute.xlu0 %355
  %357 = vrot.lane.b32.xlu0 %v41, 111
  %v358 = vpop.permute.xlu0 %357
  %vm359 = vcmask 908288
  %v360 = vsel %vm359, %v352, %v354
  %v361 = vsel %vm359, %v354, %v356
  %v362 = vsel %vm359, %v356, %v358
  %v368 = vsel %vm359, %v358, %v352
  %vm369 = vmand %vm281, %vm150
  %v370 = vsel %vm369, 1, 0
  %v371 = vlaneseq
  %v372 = vshrl.u32 %v371, 7
  %v373 = vsub.s32 0, %v372
  %v374 = vrot.slane %v370, %v373
  %v375 = vlaneseq
  %v376 = vshrl.u32 %v375, 7
  %v377 = vsub.s32 1, %v376
  %v378 = vrot.slane %v370, %v377
  %v379 = vlaneseq
  %v380 = vshrl.u32 %v379, 7
  %v381 = vsub.s32 2, %v380
  %v382 = vrot.slane %v370, %v381
  %v383 = vlaneseq
  %v384 = vshrl.u32 %v383, 7
  %v385 = vsub.s32 3, %v384
  %v386 = vrot.slane %v370, %v385
  %vm387 = vcmp.eq.s32.totalorder %v374, 1
  %vm388 = vcmp.eq.s32.totalorder %v378, 1
  %vm389 = vcmp.eq.s32.totalorder %v382, 1
  %vm390 = vcmp.eq.s32.totalorder %v386, 1
  %v391 = vsel %vm387, %v360, 0.0
  %v392 = vsel %vm388, %v361, 0.0
  %v393 = vsel %vm389, %v362, 0.0
  %v394 = vsel %vm390, %v368, 0.0
  %v399 = vrot.slane %v128, 4
  %v400 = vrot.slane %v129, 4
  %v401 = vrot.slane %v130, 4
  %v402 = vrot.slane %v131, 4
  %v411 = vrot.slane %v216, 4
  %v412 = vrot.slane %v217, 4
  %v413 = vrot.slane %v218, 4
  %v414 = vrot.slane %v219, 4
  %v423 = vrot.slane %v259, 4
  %v424 = vrot.slane %v260, 4
  %v425 = vrot.slane %v261, 4
  %v426 = vrot.slane %v262, 4
  %v435 = vrot.slane %v347, 4
  %v436 = vrot.slane %v348, 4
  %v437 = vrot.slane %v349, 4
  %v438 = vrot.slane %v350, 4
  %vm443 = vcmask 1043456
  %v444 = vsel %vm443, %v85, %v399
  %v445 = vsel %vm443, %v86, %v400
  %v446 = vsel %vm443, %v87, %v401
  %v447 = vsel %vm443, %v88, %v402
  %v448 = vsel %vm443, %v173, %v411
  %v449 = vsel %vm443, %v174, %v412
  %v450 = vsel %vm443, %v175, %v413
  %v451 = vsel %vm443, %v176, %v414
  %v452 = vsel %vm443, %v34, %v423
  %v453 = vsel %vm443, %v38, %v424
  %v454 = vsel %vm443, %v36, %v425
  %v455 = vsel %vm443, %v41, %v426
  %v456 = vsel %vm443, %v304, %v435
  %v457 = vsel %vm443, %v305, %v436
  %v458 = vsel %vm443, %v306, %v437
  %v459 = vsel %vm443, %v307, %v438
  %v460 = vld [vmem:[%s3] sm:$0xf]
  %vm461 = vcmask 293888
  %v463 = vsel %vm461, %v460, 0
  %v466 = vsel %vm443, %v391, 0
  %v469 = vsel %vm443, %v392, 0
  %v472 = vsel %vm443, %v393, 0
  %v475 = vsel %vm443, %v394, 0
  %477 = vmatprep.subr.mxu0 %v445
  %478 = vmatpush1.msra.mxu0 %v444
  %479 = vmatprep.subr.mxu0 %v449
  %480 = vmatpush1.msra.mxu0 %v448
  %481 = vmatprep.subr.mxu0 %v453
  %482 = vmatpush1.msra.mxu0 %v452
  %483 = vmatprep.subr.mxu0 %v457
  %484 = vmatpush1.msra.mxu0 %v456
  %485 = vmatprep.subr.mxu0 %v469
  %486 = vmatpush1.msra.mxu0 %v466
  %487 = vmatprep.subr.mxu0 0.0
  %488 = vmatpush1.msra.mxu0 0.0
  %489 = vmatprep.subr.mxu0 0.0
  %490 = vmatpush1.msra.mxu0 0.0
  %491 = vmatprep.subr.mxu0 0.0
  %492 = vmatpush1.msra.mxu0 0.0
  %493 = vmatprep.subr.mxu0 0.0
  %494 = vmatpush1.msra.mxu0 0.0
  %495 = vmatprep.subr.mxu0 0.0
  %496 = vmatpush1.msra.mxu0 0.0
  %497 = vmatprep.subr.mxu0 0.0
  %498 = vmatpush1.msra.mxu0 0.0
  %499 = vmatprep.subr.mxu0 0.0
  %500 = vmatpush1.msra.mxu0 0.0
  %501 = vmatprep.subr.mxu0 0.0
  %502 = vmatpush1.msra.mxu0 0.0
  %503 = vmatprep.subr.mxu0 0.0
  %504 = vmatpush1.msra.mxu0 0.0
  %505 = vmatprep.subr.mxu0 0.0
  %506 = vmatpush1.msra.mxu0 0.0
  %507 = vmatprep.subr.mxu0 0.0
  %508 = vmatpush1.msra.mxu0 0.0
  %509 = vmatprep.subr.mxu0 0.0
  %510 = vmatpush1.msra.mxu0 0.0
  %511 = vmatprep.subr.mxu0 0.0
  %512 = vmatpush1.msra.mxu0 0.0
  %513 = vmatprep.subr.mxu0 0.0
  %514 = vmatpush1.msra.mxu0 0.0
  %515 = vmatprep.subr.mxu0 0.0
  %516 = vmatpush1.msra.mxu0 0.0
  %517 = vmatprep.subr.mxu0 0.0
  %518 = vmatpush1.msra.mxu0 0.0
  %519 = vmatprep.subr.mxu0 0.0
  %520 = vmatpush1.msra.mxu0 0.0
  %521 = vmatprep.subr.mxu0 0.0
  %522 = vmatpush1.msra.mxu0 0.0
  %523 = vmatprep.subr.mxu0 0.0
  %524 = vmatpush1.msra.mxu0 0.0
  %525 = vmatprep.subr.mxu0 0.0
  %526 = vmatpush1.msra.mxu0 0.0
  %527 = vmatprep.subr.mxu0 0.0
  %528 = vmatpush1.msra.mxu0 0.0
  %529 = vmatprep.subr.mxu0 0.0
  %530 = vmatpush1.msra.mxu0 0.0
  %531 = vmatprep.subr.mxu0 0.0
  %532 = vmatpush1.msra.mxu0 0.0
  %533 = vmatprep.subr.mxu0 0.0
  %534 = vmatpush1.msra.mxu0 0.0
  %535 = vmatprep.subr.mxu0 0.0
  %536 = vmatpush1.msra.mxu0 0.0
  %537 = vmatprep.subr.mxu0 0.0
  %538 = vmatpush1.msra.mxu0 0.0
  %539 = vmatprep.subr.mxu0 0.0
  %540 = vmatpush1.msra.mxu0 0.0
  %541 = vmatprep.mubr.f32.mxu0 0.0
  %542 = vmatmul.mubr.f32.gmra.mrb[0].mxu0 %v463
  %v543 = vpop.f32.mrb[0].mxu0
  %v544 = vadd.f32 0.0, %v543
  %v545 = vpop.f32.mrb[0].mxu0
  %v546 = vadd.f32 0.0, %v545
  %547 = vdwg.mxu0
  %548 = vmatprep.subr.mxu0 %v447
  %549 = vmatpush1.msra.mxu0 %v446
  %550 = vmatprep.subr.mxu0 %v451
  %551 = vmatpush1.msra.mxu0 %v450
  %552 = vmatprep.subr.mxu0 %v455
  %553 = vmatpush1.msra.mxu0 %v454
  %554 = vmatprep.subr.mxu0 %v459
  %555 = vmatpush1.msra.mxu0 %v458
  %556 = vmatprep.subr.mxu0 %v475
  %557 = vmatpush1.msra.mxu0 %v472
  %558 = vmatprep.subr.mxu0 0.0
  %559 = vmatpush1.msra.mxu0 0.0
  %560 = vmatprep.subr.mxu0 0.0
  %561 = vmatpush1.msra.mxu0 0.0
  %562 = vmatprep.subr.mxu0 0.0
  %563 = vmatpush1.msra.mxu0 0.0
  %564 = vmatprep.subr.mxu0 0.0
  %565 = vmatpush1.msra.mxu0 0.0
  %566 = vmatprep.subr.mxu0 0.0
  %567 = vmatpush1.msra.mxu0 0.0
  %568 = vmatprep.subr.mxu0 0.0
  %569 = vmatpush1.msra.mxu0 0.0
  %570 = vmatprep.subr.mxu0 0.0
  %571 = vmatpush1.msra.mxu0 0.0
  %572 = vmatprep.subr.mxu0 0.0
  %573 = vmatpush1.msra.mxu0 0.0
  %574 = vmatprep.subr.mxu0 0.0
  %575 = vmatpush1.msra.mxu0 0.0
  %576 = vmatprep.subr.mxu0 0.0
  %577 = vmatpush1.msra.mxu0 0.0
  %578 = vmatprep.subr.mxu0 0.0
  %579 = vmatpush1.msra.mxu0 0.0
  %580 = vmatprep.subr.mxu0 0.0
  %581 = vmatpush1.msra.mxu0 0.0
  %582 = vmatprep.subr.mxu0 0.0
  %583 = vmatpush1.msra.mxu0 0.0
  %584 = vmatprep.subr.mxu0 0.0
  %585 = vmatpush1.msra.mxu0 0.0
  %586 = vmatprep.subr.mxu0 0.0
  %587 = vmatpush1.msra.mxu0 0.0
  %588 = vmatprep.subr.mxu0 0.0
  %589 = vmatpush1.msra.mxu0 0.0
  %590 = vmatprep.subr.mxu0 0.0
  %591 = vmatpush1.msra.mxu0 0.0
  %592 = vmatprep.subr.mxu0 0.0
  %593 = vmatpush1.msra.mxu0 0.0
  %594 = vmatprep.subr.mxu0 0.0
  %595 = vmatpush1.msra.mxu0 0.0
  %596 = vmatprep.subr.mxu0 0.0
  %597 = vmatpush1.msra.mxu0 0.0
  %598 = vmatprep.subr.mxu0 0.0
  %599 = vmatpush1.msra.mxu0 0.0
  %600 = vmatprep.subr.mxu0 0.0
  %601 = vmatpush1.msra.mxu0 0.0
  %602 = vmatprep.subr.mxu0 0.0
  %603 = vmatpush1.msra.mxu0 0.0
  %604 = vmatprep.subr.mxu0 0.0
  %605 = vmatpush1.msra.mxu0 0.0
  %606 = vmatprep.subr.mxu0 0.0
  %607 = vmatpush1.msra.mxu0 0.0
  %608 = vmatprep.subr.mxu0 0.0
  %609 = vmatpush1.msra.mxu0 0.0
  %610 = vmatprep.subr.mxu0 0.0
  %611 = vmatpush1.msra.mxu0 0.0
  %612 = vmatprep.mubr.f32.mxu0 0.0
  %613 = vmatmul.mubr.f32.gmra.mrb[0].mxu0 %v463
  %v614 = vpop.f32.mrb[0].mxu0
  %v615 = vadd.f32 0.0, %v614
  %v616 = vpop.f32.mrb[0].mxu0
  %v617 = vadd.f32 0.0, %v616
  %618 = vdwg.mxu0
  %v619 = vsel %vm443, %v544, 0.0
  %v620 = vsel %vm443, %v546, 0.0
  %v621 = vadd.f32 %v619, %v620
  %v622 = vsel %vm443, %v615, 0.0
  %v623 = vadd.f32 %v621, %v622
  %v624 = vsel %vm443, %v617, 0.0
  %v625 = vadd.f32 %v623, %v624
  %626 = vadd.xlane.f32.xlu0 %v625
  %v627 = vpop.xlane.xlu0 %626
  %v628 = vmul.f32 %v627, 0.001953125
  %v629 = vmul.f32 %v544, %v544
  %v630 = vmul.f32 %v546, %v546
  %v631 = vmul.f32 %v615, %v615
  %v632 = vmul.f32 %v617, %v617
  %v633 = vsel %vm443, %v629, 0.0
  %v634 = vsel %vm443, %v630, 0.0
  %v635 = vadd.f32 %v633, %v634
  %v636 = vsel %vm443, %v631, 0.0
  %v637 = vadd.f32 %v635, %v636
  %v638 = vsel %vm443, %v632, 0.0
  %v639 = vadd.f32 %v637, %v638
  %640 = vadd.xlane.f32.xlu0 %v639
  %v641 = vpop.xlane.xlu0 %640
  %v642 = vmul.f32 %v641, 0.001953125
  %v643 = vmul.f32 %v628, %v628
  %v644 = vsub.f32 %v642, %v643
  %v645 = vmax.f32 %v644, 0.0
  %v646 = vld [vmem:[%s4] sm:$0xf]
  %v647 = vadd.f32 %v645, 1e-05
  %v648 = vrsqrt.pop %v647
  %v649 = vmul.f32 %v646, %v648
  %v650 = vld [vmem:[%s5] sm:$0xf]
  %v651 = vmul.f32 %v628, %v649
  %v652 = vsub.f32 %v650, %v651
  %654 = vset.pattern.permute.xlu0 0
  %655 = vperm.xlu0 %654, %v649
  %v656 = vpop.permute.xlu0 %655
  %v658 = vmul.f32 %v544, %v656
  %v659 = vmul.f32 %v546, %v656
  %v660 = vmul.f32 %v615, %v656
  %v661 = vmul.f32 %v617, %v656
  %663 = vset.pattern.permute.xlu0 0
  %664 = vperm.xlu0 %663, %v652
  %v665 = vpop.permute.xlu0 %664
  %v667 = vadd.f32 %v658, %v665
  %v668 = vadd.f32 %v659, %v665
  %v669 = vadd.f32 %v660, %v665
  %v670 = vadd.f32 %v661, %v665
  %v671 = vmax.f32 %v667, 0.0
  %v672 = vmax.f32 %v668, 0.0
  %v673 = vmax.f32 %v669, 0.0
  %v674 = vmax.f32 %v670, 0.0
  %676 = vrot.lane.b32.xlu0 %v674, 17
  %v677 = vpop.permute.xlu0 %676
  %682 = vrot.lane.b32.xlu0 %v671, 17
  %v683 = vpop.permute.xlu0 %682
  %684 = vrot.lane.b32.xlu0 %v672, 17
  %v685 = vpop.permute.xlu0 %684
  %686 = vrot.lane.b32.xlu0 %v673, 17
  %v687 = vpop.permute.xlu0 %686
  %v688 = vsel %vm52, %v683, %v685
  %v689 = vsel %vm52, %v685, %v687
  %v690 = vsel %vm52, %v687, %v677
  %v695 = vsel %vm52, %v677, %v683
  %v696 = vsel %vm81, %v695, 0.0
  %v697 = vsel %vm82, %v688, 0.0
  %v698 = vsel %vm83, %v689, 0.0
  %v699 = vsel %vm84, %v690, 0.0
  %700 = vrot.lane.b32.xlu0 %v674, 16
  %v701 = vpop.permute.xlu0 %700
  %703 = vrot.lane.b32.xlu0 %v671, 16
  %v704 = vpop.permute.xlu0 %703
  %705 = vrot.lane.b32.xlu0 %v672, 16
  %v706 = vpop.permute.xlu0 %705
  %707 = vrot.lane.b32.xlu0 %v673, 16
  %v708 = vpop.permute.xlu0 %707
  %v709 = vsel %vm98, %v704, %v706
  %v710 = vsel %vm98, %v706, %v708
  %v711 = vsel %vm98, %v708, %v701
  %v716 = vsel %vm98, %v701, %v704
  %v717 = vsel %vm124, %v716, 0.0
  %v718 = vsel %vm125, %v709, 0.0
  %v719 = vsel %vm126, %v710, 0.0
  %v720 = vsel %vm127, %v711, 0.0
  %721 = vrot.lane.b32.xlu0 %v674, 15
  %v722 = vpop.permute.xlu0 %721
  %724 = vrot.lane.b32.xlu0 %v671, 15
  %v725 = vpop.permute.xlu0 %724
  %726 = vrot.lane.b32.xlu0 %v672, 15
  %v727 = vpop.permute.xlu0 %726
  %728 = vrot.lane.b32.xlu0 %v673, 15
  %v729 = vpop.permute.xlu0 %728
  %v730 = vsel %vm141, %v725, %v727
  %v731 = vsel %vm141, %v727, %v729
  %v732 = vsel %vm141, %v729, %v722
  %v737 = vsel %vm141, %v722, %v725
  %v738 = vsel %vm169, %v737, 0.0
  %v739 = vsel %vm170, %v730, 0.0
  %v740 = vsel %vm171, %v731, 0.0
  %v741 = vsel %vm172, %v732, 0.0
  %742 = vrot.lane.b32.xlu0 %v674, 1
  %v743 = vpop.permute.xlu0 %742
  %745 = vrot.lane.b32.xlu0 %v671, 1
  %v746 = vpop.permute.xlu0 %745
  %747 = vrot.lane.b32.xlu0 %v672, 1
  %v748 = vpop.permute.xlu0 %747
  %749 = vrot.lane.b32.xlu0 %v673, 1
  %v750 = vpop.permute.xlu0 %749
  %v751 = vsel %vm186, %v746, %v748
  %v752 = vsel %vm186, %v748, %v750
  %v753 = vsel %vm186, %v750, %v743
  %v758 = vsel %vm186, %v743, %v746
  %v759 = vsel %vm212, %v758, 0.0
  %v760 = vsel %vm213, %v751, 0.0
  %v761 = vsel %vm214, %v752, 0.0
  %v762 = vsel %vm215, %v753, 0.0
  %763 = vrot.lane.b32.xlu0 %v671, 127
  %v764 = vpop.permute.xlu0 %763
  %765 = vrot.lane.b32.xlu0 %v672, 127
  %v766 = vpop.permute.xlu0 %765
  %767 = vrot.lane.b32.xlu0 %v673, 127
  %v768 = vpop.permute.xlu0 %767
  %769 = vrot.lane.b32.xlu0 %v674, 127
  %v770 = vpop.permute.xlu0 %769
  %v771 = vsel %vm228, %v764, %v766
  %v772 = vsel %vm228, %v766, %v768
  %v773 = vsel %vm228, %v768, %v770
  %v779 = vsel %vm228, %v770, %v764
  %v780 = vsel %vm255, %v771, 0.0
  %v781 = vsel %vm256, %v772, 0.0
  %v782 = vsel %vm257, %v773, 0.0
  %v783 = vsel %vm258, %v779, 0.0
  %784 = vrot.lane.b32.xlu0 %v671, 113
  %v785 = vpop.permute.xlu0 %784
  %786 = vrot.lane.b32.xlu0 %v672, 113
  %v787 = vpop.permute.xlu0 %786
  %788 = vrot.lane.b32.xlu0 %v673, 113
  %v789 = vpop.permute.xlu0 %788
  %790 = vrot.lane.b32.xlu0 %v674, 113
  %v791 = vpop.permute.xlu0 %790
  %v792 = vsel %vm271, %v785, %v787
  %v793 = vsel %vm271, %v787, %v789
  %v794 = vsel %vm271, %v789, %v791
  %v800 = vsel %vm271, %v791, %v785
  %v801 = vsel %vm300, %v792, 0.0
  %v802 = vsel %vm301, %v793, 0.0
  %v803 = vsel %vm302, %v794, 0.0
  %v804 = vsel %vm303, %v800, 0.0
  %805 = vrot.lane.b32.xlu0 %v671, 112
  %v806 = vpop.permute.xlu0 %805
  %807 = vrot.lane.b32.xlu0 %v672, 112
  %v808 = vpop.permute.xlu0 %807
  %809 = vrot.lane.b32.xlu0 %v673, 112
  %v810 = vpop.permute.xlu0 %809
  %811 = vrot.lane.b32.xlu0 %v674, 112
  %v812 = vpop.permute.xlu0 %811
  %v813 = vsel %vm316, %v806, %v808
  %v814 = vsel %vm316, %v808, %v810
  %v815 = vsel %vm316, %v810, %v812
  %v821 = vsel %vm316, %v812, %v806
  %v822 = vsel %vm343, %v813, 0.0
  %v823 = vsel %vm344, %v814, 0.0
  %v824 = vsel %vm345, %v815, 0.0
  %v825 = vsel %vm346, %v821, 0.0
  %826 = vrot.lane.b32.xlu0 %v671, 111
  %v827 = vpop.permute.xlu0 %826
  %828 = vrot.lane.b32.xlu0 %v672, 111
  %v829 = vpop.permute.xlu0 %828
  %830 = vrot.lane.b32.xlu0 %v673, 111
  %v831 = vpop.permute.xlu0 %830
  %832 = vrot.lane.b32.xlu0 %v674, 111
  %v833 = vpop.permute.xlu0 %832
  %v834 = vsel %vm359, %v827, %v829
  %v835 = vsel %vm359, %v829, %v831
  %v836 = vsel %vm359, %v831, %v833
  %v842 = vsel %vm359, %v833, %v827
  %v843 = vsel %vm387, %v834, 0.0
  %v844 = vsel %vm388, %v835, 0.0
  %v845 = vsel %vm389, %v836, 0.0
  %v846 = vsel %vm390, %v842, 0.0
  %v851 = vrot.slane %v717, 4
  %v852 = vrot.slane %v718, 4
  %v853 = vrot.slane %v719, 4
  %v854 = vrot.slane %v720, 4
  %v863 = vrot.slane %v759, 4
  %v864 = vrot.slane %v760, 4
  %v865 = vrot.slane %v761, 4
  %v866 = vrot.slane %v762, 4
  %v875 = vrot.slane %v780, 4
  %v876 = vrot.slane %v781, 4
  %v877 = vrot.slane %v782, 4
  %v878 = vrot.slane %v783, 4
  %v887 = vrot.slane %v822, 4
  %v888 = vrot.slane %v823, 4
  %v889 = vrot.slane %v824, 4
  %v890 = vrot.slane %v825, 4
  %v895 = vsel %vm443, %v696, %v851
  %v896 = vsel %vm443, %v697, %v852
  %v897 = vsel %vm443, %v698, %v853
  %v898 = vsel %vm443, %v699, %v854
  %v899 = vsel %vm443, %v738, %v863
  %v900 = vsel %vm443, %v739, %v864
  %v901 = vsel %vm443, %v740, %v865
  %v902 = vsel %vm443, %v741, %v866
  %v903 = vsel %vm443, %v671, %v875
  %v904 = vsel %vm443, %v672, %v876
  %v905 = vsel %vm443, %v673, %v877
  %v906 = vsel %vm443, %v674, %v878
  %v907 = vsel %vm443, %v801, %v887
  %v908 = vsel %vm443, %v802, %v888
  %v909 = vsel %vm443, %v803, %v889
  %v910 = vsel %vm443, %v804, %v890
  %v911 = vld [vmem:[%s6] sm:$0xf]
  %v913 = vsel %vm461, %v911, 0
  %v916 = vsel %vm443, %v843, 0
  %v919 = vsel %vm443, %v844, 0
  %v922 = vsel %vm443, %v845, 0
  %v925 = vsel %vm443, %v846, 0
  %927 = vmatprep.subr.mxu0 %v896
  %928 = vmatpush1.msra.mxu0 %v895
  %929 = vmatprep.subr.mxu0 %v900
  %930 = vmatpush1.msra.mxu0 %v899
  %931 = vmatprep.subr.mxu0 %v904
  %932 = vmatpush1.msra.mxu0 %v903
  %933 = vmatprep.subr.mxu0 %v908
  %934 = vmatpush1.msra.mxu0 %v907
  %935 = vmatprep.subr.mxu0 %v919
  %936 = vmatpush1.msra.mxu0 %v916
  %937 = vmatprep.subr.mxu0 0.0
  %938 = vmatpush1.msra.mxu0 0.0
  %939 = vmatprep.subr.mxu0 0.0
  %940 = vmatpush1.msra.mxu0 0.0
  %941 = vmatprep.subr.mxu0 0.0
  %942 = vmatpush1.msra.mxu0 0.0
  %943 = vmatprep.subr.mxu0 0.0
  %944 = vmatpush1.msra.mxu0 0.0
  %945 = vmatprep.subr.mxu0 0.0
  %946 = vmatpush1.msra.mxu0 0.0
  %947 = vmatprep.subr.mxu0 0.0
  %948 = vmatpush1.msra.mxu0 0.0
  %949 = vmatprep.subr.mxu0 0.0
  %950 = vmatpush1.msra.mxu0 0.0
  %951 = vmatprep.subr.mxu0 0.0
  %952 = vmatpush1.msra.mxu0 0.0
  %953 = vmatprep.subr.mxu0 0.0
  %954 = vmatpush1.msra.mxu0 0.0
  %955 = vmatprep.subr.mxu0 0.0
  %956 = vmatpush1.msra.mxu0 0.0
  %957 = vmatprep.subr.mxu0 0.0
  %958 = vmatpush1.msra.mxu0 0.0
  %959 = vmatprep.subr.mxu0 0.0
  %960 = vmatpush1.msra.mxu0 0.0
  %961 = vmatprep.subr.mxu0 0.0
  %962 = vmatpush1.msra.mxu0 0.0
  %963 = vmatprep.subr.mxu0 0.0
  %964 = vmatpush1.msra.mxu0 0.0
  %965 = vmatprep.subr.mxu0 0.0
  %966 = vmatpush1.msra.mxu0 0.0
  %967 = vmatprep.subr.mxu0 0.0
  %968 = vmatpush1.msra.mxu0 0.0
  %969 = vmatprep.subr.mxu0 0.0
  %970 = vmatpush1.msra.mxu0 0.0
  %971 = vmatprep.subr.mxu0 0.0
  %972 = vmatpush1.msra.mxu0 0.0
  %973 = vmatprep.subr.mxu0 0.0
  %974 = vmatpush1.msra.mxu0 0.0
  %975 = vmatprep.subr.mxu0 0.0
  %976 = vmatpush1.msra.mxu0 0.0
  %977 = vmatprep.subr.mxu0 0.0
  %978 = vmatpush1.msra.mxu0 0.0
  %979 = vmatprep.subr.mxu0 0.0
  %980 = vmatpush1.msra.mxu0 0.0
  %981 = vmatprep.subr.mxu0 0.0
  %982 = vmatpush1.msra.mxu0 0.0
  %983 = vmatprep.subr.mxu0 0.0
  %984 = vmatpush1.msra.mxu0 0.0
  %985 = vmatprep.subr.mxu0 0.0
  %986 = vmatpush1.msra.mxu0 0.0
  %987 = vmatprep.subr.mxu0 0.0
  %988 = vmatpush1.msra.mxu0 0.0
  %989 = vmatprep.subr.mxu0 0.0
  %990 = vmatpush1.msra.mxu0 0.0
  %991 = vmatprep.mubr.f32.mxu0 0.0
  %992 = vmatmul.mubr.f32.gmra.mrb[0].mxu0 %v913
  %v993 = vpop.f32.mrb[0].mxu0
  %v994 = vadd.f32 0.0, %v993
  %v995 = vpop.f32.mrb[0].mxu0
  %v996 = vadd.f32 0.0, %v995
  %997 = vdwg.mxu0
  %998 = vmatprep.subr.mxu0 %v898
  %999 = vmatpush1.msra.mxu0 %v897
  %1000 = vmatprep.subr.mxu0 %v902
  %1001 = vmatpush1.msra.mxu0 %v901
  %1002 = vmatprep.subr.mxu0 %v906
  %1003 = vmatpush1.msra.mxu0 %v905
  %1004 = vmatprep.subr.mxu0 %v910
  %1005 = vmatpush1.msra.mxu0 %v909
  %1006 = vmatprep.subr.mxu0 %v925
  %1007 = vmatpush1.msra.mxu0 %v922
  %1008 = vmatprep.subr.mxu0 0.0
  %1009 = vmatpush1.msra.mxu0 0.0
  %1010 = vmatprep.subr.mxu0 0.0
  %1011 = vmatpush1.msra.mxu0 0.0
  %1012 = vmatprep.subr.mxu0 0.0
  %1013 = vmatpush1.msra.mxu0 0.0
  %1014 = vmatprep.subr.mxu0 0.0
  %1015 = vmatpush1.msra.mxu0 0.0
  %1016 = vmatprep.subr.mxu0 0.0
  %1017 = vmatpush1.msra.mxu0 0.0
  %1018 = vmatprep.subr.mxu0 0.0
  %1019 = vmatpush1.msra.mxu0 0.0
  %1020 = vmatprep.subr.mxu0 0.0
  %1021 = vmatpush1.msra.mxu0 0.0
  %1022 = vmatprep.subr.mxu0 0.0
  %1023 = vmatpush1.msra.mxu0 0.0
  %1024 = vmatprep.subr.mxu0 0.0
  %1025 = vmatpush1.msra.mxu0 0.0
  %1026 = vmatprep.subr.mxu0 0.0
  %1027 = vmatpush1.msra.mxu0 0.0
  %1028 = vmatprep.subr.mxu0 0.0
  %1029 = vmatpush1.msra.mxu0 0.0
  %1030 = vmatprep.subr.mxu0 0.0
  %1031 = vmatpush1.msra.mxu0 0.0
  %1032 = vmatprep.subr.mxu0 0.0
  %1033 = vmatpush1.msra.mxu0 0.0
  %1034 = vmatprep.subr.mxu0 0.0
  %1035 = vmatpush1.msra.mxu0 0.0
  %1036 = vmatprep.subr.mxu0 0.0
  %1037 = vmatpush1.msra.mxu0 0.0
  %1038 = vmatprep.subr.mxu0 0.0
  %1039 = vmatpush1.msra.mxu0 0.0
  %1040 = vmatprep.subr.mxu0 0.0
  %1041 = vmatpush1.msra.mxu0 0.0
  %1042 = vmatprep.subr.mxu0 0.0
  %1043 = vmatpush1.msra.mxu0 0.0
  %1044 = vmatprep.subr.mxu0 0.0
  %1045 = vmatpush1.msra.mxu0 0.0
  %1046 = vmatprep.subr.mxu0 0.0
  %1047 = vmatpush1.msra.mxu0 0.0
  %1048 = vmatprep.subr.mxu0 0.0
  %1049 = vmatpush1.msra.mxu0 0.0
  %1050 = vmatprep.subr.mxu0 0.0
  %1051 = vmatpush1.msra.mxu0 0.0
  %1052 = vmatprep.subr.mxu0 0.0
  %1053 = vmatpush1.msra.mxu0 0.0
  %1054 = vmatprep.subr.mxu0 0.0
  %1055 = vmatpush1.msra.mxu0 0.0
  %1056 = vmatprep.subr.mxu0 0.0
  %1057 = vmatpush1.msra.mxu0 0.0
  %1058 = vmatprep.subr.mxu0 0.0
  %1059 = vmatpush1.msra.mxu0 0.0
  %1060 = vmatprep.subr.mxu0 0.0
  %1061 = vmatpush1.msra.mxu0 0.0
  %1062 = vmatprep.mubr.f32.mxu0 0.0
  %1063 = vmatmul.mubr.f32.gmra.mrb[0].mxu0 %v913
  %v1064 = vpop.f32.mrb[0].mxu0
  %v1065 = vadd.f32 0.0, %v1064
  %v1066 = vpop.f32.mrb[0].mxu0
  %v1067 = vadd.f32 0.0, %v1066
  %1068 = vdwg.mxu0
  %v1069 = vsel %vm443, %v994, 0.0
  %v1070 = vsel %vm443, %v996, 0.0
  %v1071 = vadd.f32 %v1069, %v1070
  %v1072 = vsel %vm443, %v1065, 0.0
  %v1073 = vadd.f32 %v1071, %v1072
  %v1074 = vsel %vm443, %v1067, 0.0
  %v1075 = vadd.f32 %v1073, %v1074
  %1076 = vadd.xlane.f32.xlu0 %v1075
  %v1077 = vpop.xlane.xlu0 %1076
  %v1078 = vmul.f32 %v1077, 0.001953125
  %v1079 = vmul.f32 %v994, %v994
  %v1080 = vmul.f32 %v996, %v996
  %v1081 = vmul.f32 %v1065, %v1065
  %v1082 = vmul.f32 %v1067, %v1067
  %v1083 = vsel %vm443, %v1079, 0.0
  %v1084 = vsel %vm443, %v1080, 0.0
  %v1085 = vadd.f32 %v1083, %v1084
  %v1086 = vsel %vm443, %v1081, 0.0
  %v1087 = vadd.f32 %v1085, %v1086
  %v1088 = vsel %vm443, %v1082, 0.0
  %v1089 = vadd.f32 %v1087, %v1088
  %1090 = vadd.xlane.f32.xlu0 %v1089
  %v1091 = vpop.xlane.xlu0 %1090
  %v1092 = vmul.f32 %v1091, 0.001953125
  %v1093 = vmul.f32 %v1078, %v1078
  %v1094 = vsub.f32 %v1092, %v1093
  %v1095 = vmax.f32 %v1094, 0.0
  %v1096 = vld [vmem:[%s7] sm:$0xf]
  %v1097 = vadd.f32 %v1095, 1e-05
  %v1098 = vrsqrt.pop %v1097
  %v1099 = vmul.f32 %v1096, %v1098
  %v1100 = vld [vmem:[%s8] sm:$0xf]
  %v1101 = vmul.f32 %v1078, %v1099
  %v1102 = vsub.f32 %v1100, %v1101
  %1104 = vset.pattern.permute.xlu0 0
  %1105 = vperm.xlu0 %1104, %v1099
  %v1106 = vpop.permute.xlu0 %1105
  %v1108 = vmul.f32 %v994, %v1106
  %v1109 = vmul.f32 %v996, %v1106
  %v1110 = vmul.f32 %v1065, %v1106
  %v1111 = vmul.f32 %v1067, %v1106
  %1113 = vset.pattern.permute.xlu0 0
  %1114 = vperm.xlu0 %1113, %v1102
  %v1115 = vpop.permute.xlu0 %1114
  %v1117 = vadd.f32 %v1108, %v1115
  %v1118 = vadd.f32 %v1109, %v1115
  %v1119 = vadd.f32 %v1110, %v1115
  %v1120 = vadd.f32 %v1111, %v1115
  %v1121 = vadd.f32 %v1117, %v34
  %v1122 = vadd.f32 %v1118, %v38
  %v1123 = vadd.f32 %v1119, %v36
  %v1124 = vadd.f32 %v1120, %v41
  %v1125 = vmax.f32 %v1121, 0.0
  %v1126 = vmax.f32 %v1122, 0.0
  %v1127 = vmax.f32 %v1123, 0.0
  %v1128 = vmax.f32 %v1124, 0.0
  %v1131 = vcombine.low %v1125, %v1126
  %1133 = vst [vmem:[%s9] sm:$0xff] %v1131
  %v1136 = vcombine.low %v1127, %v1128
  %s1138 = scalar_lea.vmem %s9, 8
  %1139 = vst [vmem:[%s1138] sm:$0xff] %v1136
  // Predicated region
  $region38: #{res_layer_forward.1} parent=0 // pred_check
    _
  $region39: #{res_layer_forward.1} parent=0 // pred_check_branch
    %1141 = sbr.rel (0) target = $region41
  $region40: #{res_layer_forward.1} parent=0 // pred_region
    _
  $region41: #{res_layer_forward.1} parent=0 // pred_fallthru
    _
  // Predicated region
  $region42: #{res_layer_forward.1} parent=0 // pred_check
    _
  $region43: #{res_layer_forward.1} parent=0 // pred_check_branch
    %1143 = sbr.rel (0) target = $region45
  $region44: #{res_layer_forward.1} parent=0 // pred_region
    _
  $region45: #{res_layer_forward.1} parent=0 // pred_fallthru
    _

</llo_original>
